<compile_context>
chip_gen: v5e
topology: v5e:2x2
jax: 0.10.0
libtpu: 0.0.40
codegen_flags: <defaults>
</compile_context>

<pallas_src>
import jax
import jax.numpy as jnp
from jax.experimental import pallas as pl
from jax.experimental.pallas import tpu as pltpu

EPS = 1e-5
LANE = 128


def _round_up(n, m):
    return ((n + m - 1) // m) * m


def _make_fused_mlp_kernel(n_layers, inv_batch):
    """Fused MLP kernel body for `n_layers` Linear layers.

    Ref order: x, then per hidden layer (w, gamma, beta),
    then for the last layer (w, b), then the output ref.
    """

    def kernel(*refs):
        x_ref = refs[0]
        out_ref = refs[-1]
        p = refs[1:-1]

        x = x_ref[...]                      # bf16 [B, P0]
        idx = 0
        for i in range(n_layers):
            last = i == n_layers - 1
            w = p[idx]                      # bf16 [Pin, Pout]
            if last:
                b = p[idx + 1][...]         # f32  [1, Pout]
                idx += 2
            else:
                gamma = p[idx + 1][...]     # f32  [1, Pout]
                beta = p[idx + 2][...]      # f32  [1, Pout]
                idx += 3

            # Linear: bf16 MXU matmul, f32 accumulation.
            y = jnp.dot(x, w[...], preferred_element_type=jnp.float32)

            if last:
                # Bias only on the final (no-BN) layer.
                y = y + b
                out_ref[...] = jnp.maximum(y, 0.0).astype(out_ref.dtype)
            else:
                # BatchNorm1d, training-mode full-batch statistics, f32 math.
                # Hidden-layer bias is omitted: mean subtraction cancels it.
                # NOTE: axis=0 reductions land on the XLU; if profiling a
                # large-B variant shows XLU/VALU (not MXU) saturation, switch
                # to ones[1,B] @ y / ones[1,B] @ (y*y) to use MXU slack.
                mean = jnp.sum(y, axis=0, keepdims=True) * inv_batch
                ex2 = jnp.sum(y * y, axis=0, keepdims=True) * inv_batch
                # Clamp: single-pass variance can go slightly negative in f32.
                var = jnp.maximum(ex2 - mean * mean, 0.0)
                # Fold gamma / beta / mean into one scale & shift (FMA + max).
                scale = gamma * jax.lax.rsqrt(var + EPS)
                shift = beta - mean * scale
                y = y * scale + shift
                # ReLU with fused bf16 down-cast for the next layer's input.
                x = jnp.maximum(y, 0.0).astype(jnp.bfloat16)

    return kernel


def init_ann_params(layer_sizes, key):
    """Parameters mirroring nn.Linear / nn.BatchNorm1d, padded to lane width.

    Weights are stored pre-transposed ([in, out]) and cast to bf16; bias,
    gamma, beta stay f32.  Zero-padding keeps the math exact: padded feature
    columns stay identically zero through every layer.
    """
    params = []
    for i in range(len(layer_sizes) - 1):
        d_in, d_out = layer_sizes[i], layer_sizes[i + 1]
        p_in, p_out = _round_up(d_in, LANE), _round_up(d_out, LANE)
        key, kw, kb = jax.random.split(key, 3)
        bound = 1.0 / float(d_in) ** 0.5
        w = jax.random.uniform(kw, (d_in, d_out), jnp.float32, -bound, bound)
        b = jax.random.uniform(kb, (d_out,), jnp.float32, -bound, bound)
        w_pad = (jnp.zeros((p_in, p_out), jnp.float32)
                 .at[:d_in, :d_out].set(w)).astype(jnp.bfloat16)
        b_pad = jnp.zeros((1, p_out), jnp.float32).at[0, :d_out].set(b)
        gamma = jnp.ones((1, p_out), jnp.float32)    # BatchNorm1d.weight default
        beta = jnp.zeros((1, p_out), jnp.float32)    # BatchNorm1d.bias default
        params.append({"w": w_pad, "b": b_pad, "gamma": gamma, "beta": beta,
                       "d_in": d_in, "d_out": d_out})
    return params


def _vmem_limit_bytes(footprint_bytes):
    """Generation-aware scoped-VMEM limit.

    Large enough for the resident footprint (x4 for buffering/temporaries),
    capped at ~75% of the chip's physical VMEM (128 MiB on v5e/v6e, 64 MiB
    per TensorCore on v7x)."""
    cap = 64 * 1024 * 1024  # conservative fallback = v7x per-TC VMEM
    try:
        cap = int(pltpu.get_tpu_info().vmem_capacity_bytes)
    except Exception:
        pass
    want = max(32 * 1024 * 1024, 4 * int(footprint_bytes))
    return int(min(want, (cap * 3) // 4))


def ann_forward(params, x):
    n_layers = len(params)
    batch, d_in0 = x.shape
    p_in0 = params[0]["w"].shape[0]
    p_out_last = params[-1]["w"].shape[1]
    d_out_last = params[-1]["d_out"]

    # Pad input features to the lane-aligned width and hand it to the kernel
    # already in bf16 (zeros are inert; halves the input DMA).
    x_pad = (jnp.zeros((batch, p_in0), jnp.float32)
             .at[:, :d_in0].set(x)).astype(jnp.bfloat16)

    inputs = [x_pad]
    for i, p in enumerate(params):
        if i == n_layers - 1:
            inputs += [p["w"], p["b"]]
        else:
            # Hidden-layer bias is mathematically cancelled by BN: not passed.
            inputs += [p["w"], p["gamma"], p["beta"]]

    # Resident-footprint estimate: inputs + f32 output + widest f32 temp y.
    max_pout = max(p["w"].shape[1] for p in params)
    footprint = sum(int(a.size) * a.dtype.itemsize for a in inputs)
    footprint += batch * p_out_last * 4
    footprint += 2 * batch * max_pout * 4

    vmem = pl.BlockSpec(memory_space=pltpu.MemorySpace.VMEM)
    out_pad = pl.pallas_call(
        _make_fused_mlp_kernel(n_layers, 1.0 / batch),
        # Output kept f32 for parity with the PyTorch module; flip to bf16 if
        # the downstream consumer takes bf16 (halves the writeback DMA).
        out_shape=jax.ShapeDtypeStruct((batch, p_out_last), jnp.float32),
        in_specs=[vmem] * len(inputs),
        out_specs=vmem,
        compiler_params=pltpu.CompilerParams(
            vmem_limit_bytes=_vmem_limit_bytes(footprint)),
    )(*inputs)

    # Slice away feature padding outside the kernel (stores stay lane-dense).
    return out_pad[:, :d_out_last]


if __name__ == "__main__":
    layer_sizes = [16, 32, 64, 8]
    batch = 16

    key = jax.random.PRNGKey(0)
    key, kx = jax.random.split(key)
    x = jax.random.normal(kx, (batch, layer_sizes[0]), jnp.float32)

    params = init_ann_params(layer_sizes, key)
    out = ann_forward(params, x)
    jax.block_until_ready(out)

    assert out.shape == (batch, layer_sizes[-1])
    assert bool(jnp.all(out >= 0.0))  # ReLU output
    assert bool(jnp.all(jnp.isfinite(out)))
    print("KERNEL_OK")
</pallas_src>

<mosaic_0001>
module attributes {stable_mosaic.version = 11 : i64} {
  func.func @kernel(%arg0: memref<16x128xbf16, #tpu.memory_space<vmem>>, %arg1: memref<128x128xbf16, #tpu.memory_space<vmem>>, %arg2: memref<1x128xf32, #tpu.memory_space<vmem>>, %arg3: memref<1x128xf32, #tpu.memory_space<vmem>>, %arg4: memref<128x128xbf16, #tpu.memory_space<vmem>>, %arg5: memref<1x128xf32, #tpu.memory_space<vmem>>, %arg6: memref<1x128xf32, #tpu.memory_space<vmem>>, %arg7: memref<128x128xbf16, #tpu.memory_space<vmem>>, %arg8: memref<1x128xf32, #tpu.memory_space<vmem>>, %arg9: memref<16x128xf32, #tpu.memory_space<vmem>>) attributes {dimension_semantics = [], scalar_prefetch = 0 : i64, scratch_operands = 0 : i64, tpu.core_type = #tpu.core_type<tc>} {
    %c0 = arith.constant 0 : index
    %c0_0 = arith.constant 0 : index
    %0 = vector.load %arg0[%c0, %c0_0] : memref<16x128xbf16, #tpu.memory_space<vmem>>, vector<16x128xbf16>
    %c0_1 = arith.constant 0 : index
    %c0_2 = arith.constant 0 : index
    %1 = vector.load %arg2[%c0_1, %c0_2] : memref<1x128xf32, #tpu.memory_space<vmem>>, vector<1x128xf32>
    %c0_3 = arith.constant 0 : index
    %c0_4 = arith.constant 0 : index
    %2 = vector.load %arg3[%c0_3, %c0_4] : memref<1x128xf32, #tpu.memory_space<vmem>>, vector<1x128xf32>
    %c0_5 = arith.constant 0 : index
    %c0_6 = arith.constant 0 : index
    %3 = vector.load %arg1[%c0_5, %c0_6] : memref<128x128xbf16, #tpu.memory_space<vmem>>, vector<128x128xbf16>
    %cst = arith.constant dense<0.000000e+00> : vector<16x128xf32>
    %4 = tpu.matmul %0, %3, %cst {dimension_numbers = #tpu.dot_dimension_numbers<[1], [0], [0], [1], [0, 0, 1, 1], [], []>} : vector<16x128xbf16>, vector<128x128xbf16>, vector<16x128xf32> -> vector<16x128xf32>
    %cst_7 = arith.constant dense<0.000000e+00> : vector<128xf32>
    %5 = vector.multi_reduction <add>, %4, %cst_7 [0] : vector<16x128xf32> to vector<128xf32>
    %6 = vector.shape_cast %5 : vector<128xf32> to vector<1x128xf32>
    %cst_8 = arith.constant 6.250000e-02 : f32
    %7 = vector.broadcast %cst_8 : f32 to vector<1x128xf32>
    %8 = arith.mulf %6, %7 : vector<1x128xf32>
    %9 = arith.mulf %4, %4 : vector<16x128xf32>
    %cst_9 = arith.constant dense<0.000000e+00> : vector<128xf32>
    %10 = vector.multi_reduction <add>, %9, %cst_9 [0] : vector<16x128xf32> to vector<128xf32>
    %11 = vector.shape_cast %10 : vector<128xf32> to vector<1x128xf32>
    %cst_10 = arith.constant 6.250000e-02 : f32
    %12 = vector.broadcast %cst_10 : f32 to vector<1x128xf32>
    %13 = arith.mulf %11, %12 : vector<1x128xf32>
    %14 = arith.mulf %8, %8 : vector<1x128xf32>
    %15 = arith.subf %13, %14 : vector<1x128xf32>
    %cst_11 = arith.constant 0.000000e+00 : f32
    %16 = vector.broadcast %cst_11 : f32 to vector<1x128xf32>
    %17 = arith.maximumf %15, %16 : vector<1x128xf32>
    %cst_12 = arith.constant 9.99999974E-6 : f32
    %18 = vector.broadcast %cst_12 : f32 to vector<1x128xf32>
    %19 = arith.addf %17, %18 : vector<1x128xf32>
    %20 = math.rsqrt %19 : vector<1x128xf32>
    %21 = arith.mulf %1, %20 : vector<1x128xf32>
    %22 = arith.mulf %8, %21 : vector<1x128xf32>
    %23 = arith.subf %2, %22 : vector<1x128xf32>
    %24 = vector.broadcast %21 : vector<1x128xf32> to vector<16x128xf32>
    %25 = arith.mulf %4, %24 : vector<16x128xf32>
    %26 = vector.broadcast %23 : vector<1x128xf32> to vector<16x128xf32>
    %27 = arith.addf %25, %26 : vector<16x128xf32>
    %cst_13 = arith.constant 0.000000e+00 : f32
    %28 = vector.broadcast %cst_13 : f32 to vector<16x128xf32>
    %29 = arith.maximumf %27, %28 : vector<16x128xf32>
    %30 = arith.truncf %29 : vector<16x128xf32> to vector<16x128xbf16>
    %c0_14 = arith.constant 0 : index
    %c0_15 = arith.constant 0 : index
    %31 = vector.load %arg5[%c0_14, %c0_15] : memref<1x128xf32, #tpu.memory_space<vmem>>, vector<1x128xf32>
    %c0_16 = arith.constant 0 : index
    %c0_17 = arith.constant 0 : index
    %32 = vector.load %arg6[%c0_16, %c0_17] : memref<1x128xf32, #tpu.memory_space<vmem>>, vector<1x128xf32>
    %c0_18 = arith.constant 0 : index
    %c0_19 = arith.constant 0 : index
    %33 = vector.load %arg4[%c0_18, %c0_19] : memref<128x128xbf16, #tpu.memory_space<vmem>>, vector<128x128xbf16>
    %cst_20 = arith.constant dense<0.000000e+00> : vector<16x128xf32>
    %34 = tpu.matmul %30, %33, %cst_20 {dimension_numbers = #tpu.dot_dimension_numbers<[1], [0], [0], [1], [0, 0, 1, 1], [], []>} : vector<16x128xbf16>, vector<128x128xbf16>, vector<16x128xf32> -> vector<16x128xf32>
    %cst_21 = arith.constant dense<0.000000e+00> : vector<128xf32>
    %35 = vector.multi_reduction <add>, %34, %cst_21 [0] : vector<16x128xf32> to vector<128xf32>
    %36 = vector.shape_cast %35 : vector<128xf32> to vector<1x128xf32>
    %cst_22 = arith.constant 6.250000e-02 : f32
    %37 = vector.broadcast %cst_22 : f32 to vector<1x128xf32>
    %38 = arith.mulf %36, %37 : vector<1x128xf32>
    %39 = arith.mulf %34, %34 : vector<16x128xf32>
    %cst_23 = arith.constant dense<0.000000e+00> : vector<128xf32>
    %40 = vector.multi_reduction <add>, %39, %cst_23 [0] : vector<16x128xf32> to vector<128xf32>
    %41 = vector.shape_cast %40 : vector<128xf32> to vector<1x128xf32>
    %cst_24 = arith.constant 6.250000e-02 : f32
    %42 = vector.broadcast %cst_24 : f32 to vector<1x128xf32>
    %43 = arith.mulf %41, %42 : vector<1x128xf32>
    %44 = arith.mulf %38, %38 : vector<1x128xf32>
    %45 = arith.subf %43, %44 : vector<1x128xf32>
    %cst_25 = arith.constant 0.000000e+00 : f32
    %46 = vector.broadcast %cst_25 : f32 to vector<1x128xf32>
    %47 = arith.maximumf %45, %46 : vector<1x128xf32>
    %cst_26 = arith.constant 9.99999974E-6 : f32
    %48 = vector.broadcast %cst_26 : f32 to vector<1x128xf32>
    %49 = arith.addf %47, %48 : vector<1x128xf32>
    %50 = math.rsqrt %49 : vector<1x128xf32>
    %51 = arith.mulf %31, %50 : vector<1x128xf32>
    %52 = arith.mulf %38, %51 : vector<1x128xf32>
    %53 = arith.subf %32, %52 : vector<1x128xf32>
    %54 = vector.broadcast %51 : vector<1x128xf32> to vector<16x128xf32>
    %55 = arith.mulf %34, %54 : vector<16x128xf32>
    %56 = vector.broadcast %53 : vector<1x128xf32> to vector<16x128xf32>
    %57 = arith.addf %55, %56 : vector<16x128xf32>
    %cst_27 = arith.constant 0.000000e+00 : f32
    %58 = vector.broadcast %cst_27 : f32 to vector<16x128xf32>
    %59 = arith.maximumf %57, %58 : vector<16x128xf32>
    %60 = arith.truncf %59 : vector<16x128xf32> to vector<16x128xbf16>
    %c0_28 = arith.constant 0 : index
    %c0_29 = arith.constant 0 : index
    %61 = vector.load %arg8[%c0_28, %c0_29] : memref<1x128xf32, #tpu.memory_space<vmem>>, vector<1x128xf32>
    %c0_30 = arith.constant 0 : index
    %c0_31 = arith.constant 0 : index
    %62 = vector.load %arg7[%c0_30, %c0_31] : memref<128x128xbf16, #tpu.memory_space<vmem>>, vector<128x128xbf16>
    %cst_32 = arith.constant dense<0.000000e+00> : vector<16x128xf32>
    %63 = tpu.matmul %60, %62, %cst_32 {dimension_numbers = #tpu.dot_dimension_numbers<[1], [0], [0], [1], [0, 0, 1, 1], [], []>} : vector<16x128xbf16>, vector<128x128xbf16>, vector<16x128xf32> -> vector<16x128xf32>
    %64 = vector.broadcast %61 : vector<1x128xf32> to vector<16x128xf32>
    %65 = arith.addf %63, %64 : vector<16x128xf32>
    %cst_33 = arith.constant 0.000000e+00 : f32
    %66 = vector.broadcast %cst_33 : f32 to vector<16x128xf32>
    %67 = arith.maximumf %65, %66 : vector<16x128xf32>
    %c0_34 = arith.constant 0 : index
    %c0_35 = arith.constant 0 : index
    %68 = vector.load %arg9[%c0_34, %c0_35] : memref<16x128xf32, #tpu.memory_space<vmem>>, vector<16x128xf32>
    tpu.vector_store %arg9[%c0_34, %c0_35], %67 {strides = array<i32>} : memref<16x128xf32, #tpu.memory_space<vmem>>, vector<16x128xf32>,
    return
  }
}

</mosaic_0001>

<llo_original>
// kernel: tpu_custom_call.1
$region0: #{tpu_custom_call.1}
  #allocation0 [shape = 'u32[]', space=smem, size = 0x4, offset = 0x4, fixed_abs, tag = 'smem constant byte address 0x4 - core index']
  #allocation1 [shape = 'u32[72,128]{1,0:T(1,128)}', space=vmem, size = 0x9000, scoped, tag = 'internal scratch']
  %s0 = inlined_call_operand.hbm [shape: bf16[16,128], index: 0, kind: input, shape index: {}]
  %s1 = inlined_call_operand.hbm [shape: bf16[128,128], index: 1, kind: input, shape index: {}]
  %s2 = inlined_call_operand.vmem [shape: f32[1,128], index: 2, kind: input, shape index: {}]
  %s3 = inlined_call_operand.vmem [shape: f32[1,128], index: 3, kind: input, shape index: {}]
  %s4 = inlined_call_operand.hbm [shape: bf16[128,128], index: 4, kind: input, shape index: {}]
  %s5 = inlined_call_operand.vmem [shape: f32[1,128], index: 5, kind: input, shape index: {}]
  %s6 = inlined_call_operand.vmem [shape: f32[1,128], index: 6, kind: input, shape index: {}]
  %s7 = inlined_call_operand.hbm [shape: bf16[128,128], index: 7, kind: input, shape index: {}]
  %s8 = inlined_call_operand.vmem [shape: f32[1,128], index: 8, kind: input, shape index: {}]
  %s9 = inlined_call_operand.hbm [shape: f32[16,128], index: 9, kind: output, shape index: {}]
  %s10 = sld [smem:[#allocation0]]
  $region62: #{tpu_custom_call.1} parent=0
    _
  %s12 = ssub.s32 1, %s10
  %s13 = scalar_select 0, %s12, %s10
  $region1: #{tpu_custom_call.1} parent=0
    #allocation2 [shape = 'u8[4096]{0}', space=vmem, size = 0x1000, scoped, tag = 'input window, operand 0, single buffered']
    #allocation3 [shape = 's32[1]{0}', space=sflag, size = 0x4, scoped, tag = 'scoped memory for tpu_custom_call.1']
    #allocation4 [shape = 's32[1]{0}', space=sflag, size = 0x4, scoped, tag = 'scoped memory for tpu_custom_call.1']
    #allocation5 [shape = 'u8[32768]{0}', space=vmem, size = 0x8000, scoped, tag = 'input window, operand 1, single buffered']
    #allocation6 [shape = 's32[1]{0}', space=sflag, size = 0x4, scoped, tag = 'scoped memory for tpu_custom_call.1']
    #allocation7 [shape = 'u8[32768]{0}', space=vmem, size = 0x8000, scoped, tag = 'input window, operand 4, single buffered']
    #allocation8 [shape = 'u8[32768]{0}', space=vmem, size = 0x8000, scoped, tag = 'input window, operand 7, single buffered']
    #allocation9 [shape = 's32[1]{0}', space=sflag, size = 0x4, scoped, tag = 'scoped memory for tpu_custom_call.1']
    #allocation10 [shape = 'u8[8192]{0}', space=vmem, size = 0x2000, scoped, tag = 'output window, operand 0, single buffered']
    %14 = vsyncpa [#allocation3], 0
    %15 = vsyncpa [#allocation6], 0
    %16 = vsyncpa [#allocation9], 0
    %17 = vsyncpa [#allocation4], 0
    // Predicated region
    $region2: #{tpu_custom_call.1} parent=1 // pred_check
      _
    $region3: #{tpu_custom_call.1} parent=1 // pred_check_branch
      %19 = sbr.rel (0) target = $region5
    $region4: #{tpu_custom_call.1} parent=1 // pred_region
      %21 = vsyncadd [#allocation3], 0
      %s22 = sshll.u32 %s0, 4
      %s23 = int_to_ptr.hbm [resolvable:$true] %s22
      %s24 = sshll.u32 [#allocation2], 4
      %s25 = int_to_ptr.vmem [resolvable:$true] %s24
      %30 = dma.hbm_to_vmem [thread:$0]  %s23, 128, %s25, [#allocation3], 64, 64, 4
    $region5: #{tpu_custom_call.1} parent=1 // pred_fallthru
      _
    // Predicated region
    $region6: #{tpu_custom_call.1} parent=1 // pred_check
      _
    $region7: #{tpu_custom_call.1} parent=1 // pred_check_branch
      %32 = sbr.rel (0) target = $region9
    $region8: #{tpu_custom_call.1} parent=1 // pred_region
      %34 = vsyncadd [#allocation6], 0
      %s35 = sshll.u32 %s1, 4
      %s36 = int_to_ptr.hbm [resolvable:$true] %s35
      %s37 = sshll.u32 [#allocation5], 4
      %s38 = int_to_ptr.vmem [resolvable:$true] %s37
      %43 = dma.hbm_to_vmem [thread:$0]  %s36, 1024, %s38, [#allocation6], 64, 64, 4
    $region9: #{tpu_custom_call.1} parent=1 // pred_fallthru
      _
    // Predicated region
    $region10: #{tpu_custom_call.1} parent=1 // pred_check
      _
    $region11: #{tpu_custom_call.1} parent=1 // pred_check_branch
      %45 = sbr.rel (0) target = $region13
    $region12: #{tpu_custom_call.1} parent=1 // pred_region
      _
    $region13: #{tpu_custom_call.1} parent=1 // pred_fallthru
      _
    // Predicated region
    $region14: #{tpu_custom_call.1} parent=1 // pred_check
      _
    $region15: #{tpu_custom_call.1} parent=1 // pred_check_branch
      %47 = sbr.rel (0) target = $region17
    $region16: #{tpu_custom_call.1} parent=1 // pred_region
      _
    $region17: #{tpu_custom_call.1} parent=1 // pred_fallthru
      _
    // Predicated region
    $region18: #{tpu_custom_call.1} parent=1 // pred_check
      _
    $region19: #{tpu_custom_call.1} parent=1 // pred_check_branch
      %49 = sbr.rel (0) target = $region21
    $region20: #{tpu_custom_call.1} parent=1 // pred_region
      %51 = vsyncadd [#allocation6], 0
      %s52 = sshll.u32 %s4, 4
      %s53 = int_to_ptr.hbm [resolvable:$true] %s52
      %s54 = sshll.u32 [#allocation7], 4
      %s55 = int_to_ptr.vmem [resolvable:$true] %s54
      %60 = dma.hbm_to_vmem [thread:$0]  %s53, 1024, %s55, [#allocation6], 64, 64, 4
    $region21: #{tpu_custom_call.1} parent=1 // pred_fallthru
      _
    // Predicated region
    $region22: #{tpu_custom_call.1} parent=1 // pred_check
      _
    $region23: #{tpu_custom_call.1} parent=1 // pred_check_branch
      %62 = sbr.rel (0) target = $region25
    $region24: #{tpu_custom_call.1} parent=1 // pred_region
      _
    $region25: #{tpu_custom_call.1} parent=1 // pred_fallthru
      _
    // Predicated region
    $region26: #{tpu_custom_call.1} parent=1 // pred_check
      _
    $region27: #{tpu_custom_call.1} parent=1 // pred_check_branch
      %64 = sbr.rel (0) target = $region29
    $region28: #{tpu_custom_call.1} parent=1 // pred_region
      _
    $region29: #{tpu_custom_call.1} parent=1 // pred_fallthru
      _
    // Predicated region
    $region30: #{tpu_custom_call.1} parent=1 // pred_check
      _
    $region31: #{tpu_custom_call.1} parent=1 // pred_check_branch
      %66 = sbr.rel (0) target = $region33
    $region32: #{tpu_custom_call.1} parent=1 // pred_region
      %68 = vsyncadd [#allocation9], 0
      %s69 = sshll.u32 %s7, 4
      %s70 = int_to_ptr.hbm [resolvable:$true] %s69
      %s71 = sshll.u32 [#allocation8], 4
      %s72 = int_to_ptr.vmem [resolvable:$true] %s71
      %77 = dma.hbm_to_vmem [thread:$0]  %s70, 1024, %s72, [#allocation9], 64, 64, 4
    $region33: #{tpu_custom_call.1} parent=1 // pred_fallthru
      _
    // Predicated region
    $region34: #{tpu_custom_call.1} parent=1 // pred_check
      _
    $region35: #{tpu_custom_call.1} parent=1 // pred_check_branch
      %79 = sbr.rel (0) target = $region37
    $region36: #{tpu_custom_call.1} parent=1 // pred_region
      _
    $region37: #{tpu_custom_call.1} parent=1 // pred_fallthru
      _
    // Predicated region
    $region38: #{tpu_custom_call.1} parent=1 // pred_check
      _
    $region39: #{tpu_custom_call.1} parent=1 // pred_check_branch
      %81 = sbr.rel (0) target = $region41
    $region40: #{tpu_custom_call.1} parent=1 // pred_region
      %83 = dma.done [#allocation3], 128
    $region41: #{tpu_custom_call.1} parent=1 // pred_fallthru
      _
    // Predicated region
    $region42: #{tpu_custom_call.1} parent=1 // pred_check
      _
    $region43: #{tpu_custom_call.1} parent=1 // pred_check_branch
      %85 = sbr.rel (0) target = $region45
    $region44: #{tpu_custom_call.1} parent=1 // pred_region
      %87 = dma.done [#allocation6], 1024
    $region45: #{tpu_custom_call.1} parent=1 // pred_fallthru
      _
    // Predicated region
    $region46: #{tpu_custom_call.1} parent=1 // pred_check
      _
    $region47: #{tpu_custom_call.1} parent=1 // pred_check_branch
      %89 = sbr.rel (0) target = $region49
    $region48: #{tpu_custom_call.1} parent=1 // pred_region
      %91 = dma.done [#allocation6], 1024
    $region49: #{tpu_custom_call.1} parent=1 // pred_fallthru
      _
    // Predicated region
    $region50: #{tpu_custom_call.1} parent=1 // pred_check
      _
    $region51: #{tpu_custom_call.1} parent=1 // pred_check_branch
      %93 = sbr.rel (0) target = $region53
    $region52: #{tpu_custom_call.1} parent=1 // pred_region
      %95 = dma.done [#allocation9], 1024
    $region53: #{tpu_custom_call.1} parent=1 // pred_fallthru
      _
    %v96 = vld [vmem:[#allocation2] sm:$0xf]
    %v97 = vld [vmem:[#allocation2 + $0x4] sm:$0xf]
    %v98 = vld [vmem:[%s2] sm:$0x1]
    %v99 = vld [vmem:[%s3] sm:$0x1]
    %v100 = vld [vmem:[#allocation5] sm:$0xf]
    %v101 = vld [vmem:[#allocation5 + $0x4] sm:$0xf]
    %v102 = vld [vmem:[#allocation5 + $0x8] sm:$0xf]
    %v103 = vld [vmem:[#allocation5 + $0xc] sm:$0xf]
    %v104 = vld [vmem:[#allocation5 + $0x10] sm:$0xf]
    %v105 = vld [vmem:[#allocation5 + $0x14] sm:$0xf]
    %v106 = vld [vmem:[#allocation5 + $0x18] sm:$0xf]
    %v107 = vld [vmem:[#allocation5 + $0x1c] sm:$0xf]
    %v108 = vld [vmem:[#allocation5 + $0x20] sm:$0xf]
    %v109 = vld [vmem:[#allocation5 + $0x24] sm:$0xf]
    %v110 = vld [vmem:[#allocation5 + $0x28] sm:$0xf]
    %v111 = vld [vmem:[#allocation5 + $0x2c] sm:$0xf]
    %v112 = vld [vmem:[#allocation5 + $0x30] sm:$0xf]
    %v113 = vld [vmem:[#allocation5 + $0x34] sm:$0xf]
    %v114 = vld [vmem:[#allocation5 + $0x38] sm:$0xf]
    %v115 = vld [vmem:[#allocation5 + $0x3c] sm:$0xf]
    %v118 = vunpack.c.l.b16 %v96
    %v119 = vunpack.c.l.b16 %v97
    %v120 = vpack.c.b16 %v119, %v118
    %v138 = vunpack.c.l.b16 %v100
    %v139 = vunpack.c.l.b16 %v101
    %v140 = vunpack.c.l.b16 %v102
    %v141 = vunpack.c.l.b16 %v103
    %v142 = vunpack.c.l.b16 %v104
    %v143 = vunpack.c.l.b16 %v105
    %v144 = vunpack.c.l.b16 %v106
    %v145 = vunpack.c.l.b16 %v107
    %v146 = vunpack.c.l.b16 %v108
    %v147 = vunpack.c.l.b16 %v109
    %v148 = vunpack.c.l.b16 %v110
    %v149 = vunpack.c.l.b16 %v111
    %v150 = vunpack.c.l.b16 %v112
    %v151 = vunpack.c.l.b16 %v113
    %v152 = vunpack.c.l.b16 %v114
    %v153 = vunpack.c.l.b16 %v115
    %v154 = vpack.c.b16 %v139, %v138
    %v155 = vpack.c.b16 %v141, %v140
    %v156 = vpack.c.b16 %v143, %v142
    %v157 = vpack.c.b16 %v145, %v144
    %v158 = vpack.c.b16 %v147, %v146
    %v159 = vpack.c.b16 %v149, %v148
    %v160 = vpack.c.b16 %v151, %v150
    %v161 = vpack.c.b16 %v153, %v152
    %170 = vmatpush.bf16.msra.mxu0 %v161
    %171 = vmatpush.bf16.msra.mxu0 %v160
    %172 = vmatpush.bf16.msra.mxu0 %v159
    %173 = vmatpush.bf16.msra.mxu0 %v158
    %174 = vmatpush.bf16.msra.mxu0 %v157
    %175 = vmatpush.bf16.msra.mxu0 %v156
    %176 = vmatpush.bf16.msra.mxu0 %v155
    %177 = vmatpush.bf16.msra.mxu0 %v154
    %178 = vmatmul.bf16.gmra.mxu0 %v120
    %v179 = vpop.f32.mrf.mxu0
    %v180 = vadd.f32 0.0, %v179
    %v181 = vpop.f32.mrf.mxu0
    %v182 = vadd.f32 0.0, %v181
    %183 = vdwg.mxu0
    %v184 = vadd.f32 %v180, %v182
    %v185 = vrot.slane %v184, 4
    %v186 = vadd.f32 %v184, %v185
    %v187 = vrot.slane %v186, 2
    %v188 = vadd.f32 %v186, %v187
    %v189 = vrot.slane %v188, 1
    %v190 = vadd.f32 %v188, %v189
    %v191 = vmul.f32 %v190, 0.0625
    %v192 = vmul.f32 %v180, %v180
    %v193 = vmul.f32 %v182, %v182
    %v194 = vadd.f32 %v192, %v193
    %v195 = vrot.slane %v194, 4
    %v196 = vadd.f32 %v194, %v195
    %v197 = vrot.slane %v196, 2
    %v198 = vadd.f32 %v196, %v197
    %v199 = vrot.slane %v198, 1
    %v200 = vadd.f32 %v198, %v199
    %v201 = vmul.f32 %v200, 0.0625
    %v202 = vmul.f32 %v191, %v191
    %v203 = vsub.f32 %v201, %v202
    %v204 = vmax.f32 %v203, 0.0
    %v205 = vadd.f32 %v204, 1e-05
    %v206 = vrsqrt.pop %v205
    %v207 = vmul.f32 %v206, %v205
    %v208 = vmul.f32 %v207, %v206
    %v209 = vmul.f32 0.5, %v208
    %v210 = vsub.f32 1.5, %v209
    %v211 = vmul.f32 %v206, %v210
    %vm212 = vweird.f32 %v205
    %vm213 = vweird.f32 %v206
    %vm214 = vmor %vm212, %vm213
    %v215 = vsel %vm214, %v206, %v211
    %v216 = vmul.f32 %v98, %v215
    %v217 = vmul.f32 %v191, %v216
    %v218 = vsub.f32 %v99, %v217
    %v220 = vperm.slane %v216, 0
    %v222 = vmul.f32 %v180, %v220
    %v223 = vmul.f32 %v182, %v220
    %v225 = vperm.slane %v218, 0
    %v227 = vadd.f32 %v222, %v225
    %v228 = vadd.f32 %v223, %v225
    %v229 = vmax.f32 %v227, 0.0
    %v230 = vmax.f32 %v228, 0.0
    %v231 = vpack.c.bf16 %v230, %v229
    %v232 = vld [vmem:[%s5] sm:$0x1]
    %v233 = vld [vmem:[%s6] sm:$0x1]
    %v234 = vld [vmem:[#allocation7] sm:$0xf]
    %v235 = vld [vmem:[#allocation7 + $0x4] sm:$0xf]
    %v236 = vld [vmem:[#allocation7 + $0x8] sm:$0xf]
    %v237 = vld [vmem:[#allocation7 + $0xc] sm:$0xf]
    %v238 = vld [vmem:[#allocation7 + $0x10] sm:$0xf]
    %v239 = vld [vmem:[#allocation7 + $0x14] sm:$0xf]
    %v240 = vld [vmem:[#allocation7 + $0x18] sm:$0xf]
    %v241 = vld [vmem:[#allocation7 + $0x1c] sm:$0xf]
    %v242 = vld [vmem:[#allocation7 + $0x20] sm:$0xf]
    %v243 = vld [vmem:[#allocation7 + $0x24] sm:$0xf]
    %v244 = vld [vmem:[#allocation7 + $0x28] sm:$0xf]
    %v245 = vld [vmem:[#allocation7 + $0x2c] sm:$0xf]
    %v246 = vld [vmem:[#allocation7 + $0x30] sm:$0xf]
    %v247 = vld [vmem:[#allocation7 + $0x34] sm:$0xf]
    %v248 = vld [vmem:[#allocation7 + $0x38] sm:$0xf]
    %v249 = vld [vmem:[#allocation7 + $0x3c] sm:$0xf]
    %v266 = vunpack.c.l.b16 %v234
    %v267 = vunpack.c.l.b16 %v235
    %v268 = vunpack.c.l.b16 %v236
    %v269 = vunpack.c.l.b16 %v237
    %v270 = vunpack.c.l.b16 %v238
    %v271 = vunpack.c.l.b16 %v239
    %v272 = vunpack.c.l.b16 %v240
    %v273 = vunpack.c.l.b16 %v241
    %v274 = vunpack.c.l.b16 %v242
    %v275 = vunpack.c.l.b16 %v243
    %v276 = vunpack.c.l.b16 %v244
    %v277 = vunpack.c.l.b16 %v245
    %v278 = vunpack.c.l.b16 %v246
    %v279 = vunpack.c.l.b16 %v247
    %v280 = vunpack.c.l.b16 %v248
    %v281 = vunpack.c.l.b16 %v249
    %v282 = vpack.c.b16 %v267, %v266
    %v283 = vpack.c.b16 %v269, %v268
    %v284 = vpack.c.b16 %v271, %v270
    %v285 = vpack.c.b16 %v273, %v272
    %v286 = vpack.c.b16 %v275, %v274
    %v287 = vpack.c.b16 %v277, %v276
    %v288 = vpack.c.b16 %v279, %v278
    %v289 = vpack.c.b16 %v281, %v280
    %298 = vmatpush.bf16.msra.mxu0 %v289
    %299 = vmatpush.bf16.msra.mxu0 %v288
    %300 = vmatpush.bf16.msra.mxu0 %v287
    %301 = vmatpush.bf16.msra.mxu0 %v286
    %302 = vmatpush.bf16.msra.mxu0 %v285
    %303 = vmatpush.bf16.msra.mxu0 %v284
    %304 = vmatpush.bf16.msra.mxu0 %v283
    %305 = vmatpush.bf16.msra.mxu0 %v282
    %306 = vmatmul.bf16.gmra.mxu0 %v231
    %v307 = vpop.f32.mrf.mxu0
    %v308 = vadd.f32 0.0, %v307
    %v309 = vpop.f32.mrf.mxu0
    %v310 = vadd.f32 0.0, %v309
    %311 = vdwg.mxu0
    %v312 = vadd.f32 %v308, %v310
    %v313 = vrot.slane %v312, 4
    %v314 = vadd.f32 %v312, %v313
    %v315 = vrot.slane %v314, 2
    %v316 = vadd.f32 %v314, %v315
    %v317 = vrot.slane %v316, 1
    %v318 = vadd.f32 %v316, %v317
    %v319 = vmul.f32 %v318, 0.0625
    %v320 = vmul.f32 %v308, %v308
    %v321 = vmul.f32 %v310, %v310
    %v322 = vadd.f32 %v320, %v321
    %v323 = vrot.slane %v322, 4
    %v324 = vadd.f32 %v322, %v323
    %v325 = vrot.slane %v324, 2
    %v326 = vadd.f32 %v324, %v325
    %v327 = vrot.slane %v326, 1
    %v328 = vadd.f32 %v326, %v327
    %v329 = vmul.f32 %v328, 0.0625
    %v330 = vmul.f32 %v319, %v319
    %v331 = vsub.f32 %v329, %v330
    %v332 = vmax.f32 %v331, 0.0
    %v333 = vadd.f32 %v332, 1e-05
    %v334 = vrsqrt.pop %v333
    %v335 = vmul.f32 %v334, %v333
    %v336 = vmul.f32 %v335, %v334
    %v337 = vmul.f32 0.5, %v336
    %v338 = vsub.f32 1.5, %v337
    %v339 = vmul.f32 %v334, %v338
    %vm340 = vweird.f32 %v333
    %vm341 = vweird.f32 %v334
    %vm342 = vmor %vm340, %vm341
    %v343 = vsel %vm342, %v334, %v339
    %v344 = vmul.f32 %v232, %v343
    %v345 = vmul.f32 %v319, %v344
    %v346 = vsub.f32 %v233, %v345
    %v348 = vperm.slane %v344, 0
    %v350 = vmul.f32 %v308, %v348
    %v351 = vmul.f32 %v310, %v348
    %v353 = vperm.slane %v346, 0
    %v355 = vadd.f32 %v350, %v353
    %v356 = vadd.f32 %v351, %v353
    %v357 = vmax.f32 %v355, 0.0
    %v358 = vmax.f32 %v356, 0.0
    %v359 = vpack.c.bf16 %v358, %v357
    %v360 = vld [vmem:[%s8] sm:$0x1]
    %v361 = vld [vmem:[#allocation8] sm:$0xf]
    %v362 = vld [vmem:[#allocation8 + $0x4] sm:$0xf]
    %v363 = vld [vmem:[#allocation8 + $0x8] sm:$0xf]
    %v364 = vld [vmem:[#allocation8 + $0xc] sm:$0xf]
    %v365 = vld [vmem:[#allocation8 + $0x10] sm:$0xf]
    %v366 = vld [vmem:[#allocation8 + $0x14] sm:$0xf]
    %v367 = vld [vmem:[#allocation8 + $0x18] sm:$0xf]
    %v368 = vld [vmem:[#allocation8 + $0x1c] sm:$0xf]
    %v369 = vld [vmem:[#allocation8 + $0x20] sm:$0xf]
    %v370 = vld [vmem:[#allocation8 + $0x24] sm:$0xf]
    %v371 = vld [vmem:[#allocation8 + $0x28] sm:$0xf]
    %v372 = vld [vmem:[#allocation8 + $0x2c] sm:$0xf]
    %v373 = vld [vmem:[#allocation8 + $0x30] sm:$0xf]
    %v374 = vld [vmem:[#allocation8 + $0x34] sm:$0xf]
    %v375 = vld [vmem:[#allocation8 + $0x38] sm:$0xf]
    %v376 = vld [vmem:[#allocation8 + $0x3c] sm:$0xf]
    %v378 = vperm.slane %v360, 0
    %v396 = vunpack.c.l.b16 %v361
    %v397 = vunpack.c.l.b16 %v362
    %v398 = vunpack.c.l.b16 %v363
    %v399 = vunpack.c.l.b16 %v364
    %v400 = vunpack.c.l.b16 %v365
    %v401 = vunpack.c.l.b16 %v366
    %v402 = vunpack.c.l.b16 %v367
    %v403 = vunpack.c.l.b16 %v368
    %v404 = vunpack.c.l.b16 %v369
    %v405 = vunpack.c.l.b16 %v370
    %v406 = vunpack.c.l.b16 %v371
    %v407 = vunpack.c.l.b16 %v372
    %v408 = vunpack.c.l.b16 %v373
    %v409 = vunpack.c.l.b16 %v374
    %v410 = vunpack.c.l.b16 %v375
    %v411 = vunpack.c.l.b16 %v376
    %v412 = vpack.c.b16 %v397, %v396
    %v413 = vpack.c.b16 %v399, %v398
    %v414 = vpack.c.b16 %v401, %v400
    %v415 = vpack.c.b16 %v403, %v402
    %v416 = vpack.c.b16 %v405, %v404
    %v417 = vpack.c.b16 %v407, %v406
    %v418 = vpack.c.b16 %v409, %v408
    %v419 = vpack.c.b16 %v411, %v410
    %428 = vmatpush.bf16.msra.mxu0 %v419
    %429 = vmatpush.bf16.msra.mxu0 %v418
    %430 = vmatpush.bf16.msra.mxu0 %v417
    %431 = vmatpush.bf16.msra.mxu0 %v416
    %432 = vmatpush.bf16.msra.mxu0 %v415
    %433 = vmatpush.bf16.msra.mxu0 %v414
    %434 = vmatpush.bf16.msra.mxu0 %v413
    %435 = vmatpush.bf16.msra.mxu0 %v412
    %436 = vmatmul.bf16.gmra.mxu0 %v359
    %v437 = vpop.f32.mrf.mxu0
    %v438 = vadd.f32 %v378, %v437
    %v439 = vpop.f32.mrf.mxu0
    %v440 = vadd.f32 %v378, %v439
    %441 = vdwg.mxu0
    %v442 = vmax.f32 %v438, 0.0
    %v443 = vmax.f32 %v440, 0.0
    %444 = vst [vmem:[#allocation10] sm:$0xff] %v442
    %445 = vst [vmem:[#allocation10 + $0x8] sm:$0xff] %v443
    // Predicated region
    $region54: #{tpu_custom_call.1} parent=1 // pred_check
      _
    $region55: #{tpu_custom_call.1} parent=1 // pred_check_branch
      %447 = sbr.rel (0) target = $region57
    $region56: #{tpu_custom_call.1} parent=1 // pred_region
      %449 = vsyncadd [#allocation4], 0
      %s450 = sshll.u32 [#allocation10], 4
      %s451 = int_to_ptr.vmem [resolvable:$true] %s450
      %s452 = sshll.u32 %s9, 4
      %s453 = int_to_ptr.hbm [resolvable:$true] %s452
      %458 = dma.vmem_to_hbm [thread:$0]  %s451, 256, %s453, [#allocation4], 128, 128, 8
    $region57: #{tpu_custom_call.1} parent=1 // pred_fallthru
      _
    // Predicated region
    $region58: #{tpu_custom_call.1} parent=1 // pred_check
      _
    $region59: #{tpu_custom_call.1} parent=1 // pred_check_branch
      %460 = sbr.rel (0) target = $region61
    $region60: #{tpu_custom_call.1} parent=1 // pred_region
      %462 = dma.done [#allocation4], 256
    $region61: #{tpu_custom_call.1} parent=1 // pred_fallthru
      _
    %463 = vsyncpa [#allocation3], 1
    %464 = vsyncpa [#allocation6], 1
    %465 = vsyncpa [#allocation9], 1
    %466 = vsyncpa [#allocation4], 1

</llo_original>
